<compile_context>
chip_gen: v5e
topology: v5e:2x2
jax: 0.10.0
libtpu: 0.0.40
codegen_flags: <defaults>
</compile_context>

<pallas_src>
import functools

import jax
import jax.numpy as jnp
from jax.experimental import pallas as pl
from jax.experimental.pallas import tpu as pltpu


# ----------------------------------------------------------------------------
# Kernel: lane-dense (D, TB) tiles, batch on lanes, (1, TB) lane-dense output.
# ----------------------------------------------------------------------------
def _monojoint_kernel(dira_ref, dirm_ref, loss_ref, out_ref, *, input_dim, to_train):
    # dira_ref: (D, 1)   shared direction_a parameter (lane-broadcast column)
    # dirm_ref: (D, TB)  dir_matrix tile, batch on lanes
    # loss_ref: (D, TB)  losses tile, batch on lanes
    # out_ref : (1, TB)  lane-dense output tile
    x = dirm_ref[...] * dira_ref[...]                            # (D, TB)
    # Numerically stable softplus (beta=1), matches nn.Softplus incl. large-x regime.
    sp = jnp.maximum(x, 0.0) + jnp.log1p(jnp.exp(-jnp.abs(x)))   # (D, TB)

    d = jnp.sum(sp * loss_ref[...], axis=0, keepdims=True)       # (1, TB) sublane reduce
    if to_train:
        s = jnp.sum(sp, axis=0, keepdims=True)                   # (1, TB) sublane reduce
        out_ref[...] = (jnp.float32(input_dim) * d) * pl.reciprocal(s, approx=False)
    else:
        out_ref[...] = d


# ----------------------------------------------------------------------------
# Batched wrapper: B independent MonoJoint evaluations per pallas_call launch.
# direction_a is the shared module parameter; dir_matrix / losses are (D, B)
# (task axis on sublanes, batch axis on lanes).
# ----------------------------------------------------------------------------
def monojoint_forward_batched(direction_a, dir_matrix_db, losses_db, *,
                              to_train=True, block_b=None):
    """direction_a: (1, D) or (D,); dir_matrix_db, losses_db: (D, B).

    Returns a (1, B) float32 array of per-instance forward values.
    """
    D, B = dir_matrix_db.shape
    dira_col = jnp.reshape(direction_a.astype(jnp.float32), (D, 1))
    dirm = dir_matrix_db.astype(jnp.float32)
    loss = losses_db.astype(jnp.float32)

    # Batch-axis tiling: only tile when B is large and divides cleanly into
    # 128-multiple lane blocks; otherwise a single full-array VMEM window is best
    # (per-grid-step overhead ~0.35 us dwarfs the work at small B).
    if block_b is None:
        block_b = min(B, 16384)                 # <= 8*16384*4 B = 512 KiB per buffer
    if block_b >= B or B % block_b != 0 or block_b % 128 != 0:
        block_b = B                             # block == full array dims: always legal
    grid = (B // block_b,)

    kernel = functools.partial(_monojoint_kernel, input_dim=D, to_train=to_train)
    return pl.pallas_call(
        kernel,
        out_shape=jax.ShapeDtypeStruct((1, B), jnp.float32),
        grid_spec=pltpu.PrefetchScalarGridSpec(
            num_scalar_prefetch=0,
            grid=grid,
            in_specs=[
                # Constant block: the shared parameter stays VMEM-resident across steps.
                pl.BlockSpec((D, 1), lambda i: (0, 0)),
                pl.BlockSpec((D, block_b), lambda i: (0, i)),
                pl.BlockSpec((D, block_b), lambda i: (0, i)),
            ],
            out_specs=pl.BlockSpec((1, block_b), lambda i: (0, i)),
        ),
        compiler_params=pltpu.CompilerParams(
            # Independent batch tiles: shards across both TensorCores on v7x.
            dimension_semantics=("parallel",),
        ),
    )(dira_col, dirm, loss)


# ----------------------------------------------------------------------------
# Single-instance wrapper (the literal PyTorch forward): routes through the
# batched kernel with B=1 -- no concat/packing, no separate kernel.
# ----------------------------------------------------------------------------
def monojoint_forward(direction_a, dir_matrix, losses, *, to_train=True):
    """direction_a: (1, D); dir_matrix, losses: (D,) or (1, D). Returns (1, 1) f32."""
    D = direction_a.shape[-1]
    dirm = jnp.reshape(dir_matrix.astype(jnp.float32), (D, 1))
    lss = jnp.reshape(losses.astype(jnp.float32), (D, 1))
    # TODO(synk): at D=8 this path is pure launch overhead; callers that can batch
    # their MonoJoint evaluations should prefer monojoint_forward_batched.
    return monojoint_forward_batched(direction_a, dirm, lss, to_train=to_train)


# ----------------------------------------------------------------------------
# Pure-JAX reference (mirrors the PyTorch forward).
# ----------------------------------------------------------------------------
def monojoint_reference(direction_a, dir_matrix, losses, *, to_train=True):
    dirm = jnp.reshape(dir_matrix, (1, -1)).astype(jnp.float32)
    dira = jnp.reshape(direction_a, (1, -1)).astype(jnp.float32)
    loss = jnp.reshape(losses, (1, -1)).astype(jnp.float32)
    sp = jax.nn.softplus(dirm * dira)
    if to_train:
        sp = direction_a.shape[-1] * sp / jnp.sum(sp)
    return jnp.sum(sp * loss)


if __name__ == "__main__":
    input_dim = 8  # number of tasks / losses (maps onto the 8 vreg sublanes)

    key = jax.random.PRNGKey(0)
    k_dira, k_ceff, k_dirm, k_loss, k_bdirm, k_bloss = jax.random.split(key, 6)

    # Parameters (torch.rand -> uniform [0, 1)); causal_effect is unused in forward.
    direction_a = jax.random.uniform(k_dira, (1, input_dim), dtype=jnp.float32)
    causal_effect_param = jax.random.uniform(k_ceff, (1, input_dim), dtype=jnp.float32)

    # Inputs: lists of per-task scalars, stacked -> (input_dim,)
    dir_matrix = jax.random.uniform(k_dirm, (input_dim,), dtype=jnp.float32)
    losses = jax.random.uniform(k_loss, (input_dim,), dtype=jnp.float32) * 2.0

    # --- to_train=True path (single instance) ---
    out = jax.block_until_ready(
        monojoint_forward(direction_a, dir_matrix, losses, to_train=True)
    )
    ref = monojoint_reference(direction_a, dir_matrix, losses, to_train=True)
    assert jnp.allclose(out[0, 0], ref, rtol=1e-5, atol=1e-5), (out, ref)

    # --- to_train=False (eval) path ---
    out_eval = jax.block_until_ready(
        monojoint_forward(direction_a, dir_matrix, losses, to_train=False)
    )
    ref_eval = monojoint_reference(direction_a, dir_matrix, losses, to_train=False)
    assert jnp.allclose(out_eval[0, 0], ref_eval, rtol=1e-5, atol=1e-5), (out_eval, ref_eval)

    # --- batched path, small B: single VMEM window, lane-dense (D, B) layout ---
    B_small = 4
    dirm_b = jax.random.uniform(k_bdirm, (input_dim, B_small), dtype=jnp.float32)
    loss_b = jax.random.uniform(k_bloss, (input_dim, B_small), dtype=jnp.float32) * 2.0
    out_b = jax.block_until_ready(
        monojoint_forward_batched(direction_a, dirm_b, loss_b, to_train=True)
    )
    ref_b = jnp.stack(
        [
            monojoint_reference(direction_a, dirm_b[:, i], loss_b[:, i], to_train=True)
            for i in range(B_small)
        ]
    ).reshape(1, B_small)
    assert jnp.allclose(out_b, ref_b, rtol=1e-5, atol=1e-5), (out_b, ref_b)

    # --- batched path, larger B with an explicit batch grid (exercises the
    #     pipelined / megacore-parallel code path with 128-lane tiles) ---
    B_big = 512
    kg1, kg2 = jax.random.split(jax.random.PRNGKey(1))
    dirm_g = jax.random.uniform(kg1, (input_dim, B_big), dtype=jnp.float32)
    loss_g = jax.random.uniform(kg2, (input_dim, B_big), dtype=jnp.float32) * 2.0
    out_g = jax.block_until_ready(
        monojoint_forward_batched(direction_a, dirm_g, loss_g, to_train=True, block_b=128)
    )
    # Vectorized reference for the big batch.
    sp_g = jax.nn.softplus(dirm_g * jnp.reshape(direction_a, (input_dim, 1)))
    ref_g = (input_dim * jnp.sum(sp_g * loss_g, axis=0, keepdims=True)
             / jnp.sum(sp_g, axis=0, keepdims=True))
    assert jnp.allclose(out_g, ref_g, rtol=1e-5, atol=1e-5), (out_g, ref_g)

    print("KERNEL_OK")
</pallas_src>

<mosaic_0001>
module attributes {stable_mosaic.version = 11 : i64} {
  func.func @_monojoint_kernel(%arg0: i32, %arg1: memref<8x1xf32, #tpu.memory_space<vmem>>, %arg2: memref<8x1xf32, #tpu.memory_space<vmem>>, %arg3: memref<8x1xf32, #tpu.memory_space<vmem>>, %arg4: memref<1x1xf32, #tpu.memory_space<vmem>>) attributes {dimension_semantics = [#tpu.dimension_semantics<parallel>], iteration_bounds = array<i64: 1>, scalar_prefetch = 0 : i64, scratch_operands = 0 : i64, tpu.core_type = #tpu.core_type<tc>, window_params = [{pipeline_mode = #tpu.pipeline_mode<synchronous>, transform_indices = @transform_0, window_bounds = array<i64: 8, 1>}, {transform_indices = @transform_1, window_bounds = array<i64: 8, 1>}, {transform_indices = @transform_2, window_bounds = array<i64: 8, 1>}, {transform_indices = @transform_3, window_bounds = array<i64: 1, 1>}]} {
    %c0 = arith.constant 0 : index
    %c0_0 = arith.constant 0 : index
    %0 = vector.load %arg2[%c0, %c0_0] : memref<8x1xf32, #tpu.memory_space<vmem>>, vector<8x1xf32>
    %c0_1 = arith.constant 0 : index
    %c0_2 = arith.constant 0 : index
    %1 = vector.load %arg1[%c0_1, %c0_2] : memref<8x1xf32, #tpu.memory_space<vmem>>, vector<8x1xf32>
    %2 = arith.mulf %0, %1 : vector<8x1xf32>
    %cst = arith.constant 0.000000e+00 : f32
    %3 = vector.broadcast %cst : f32 to vector<8x1xf32>
    %4 = arith.maximumf %2, %3 : vector<8x1xf32>
    %5 = math.absf %2 : vector<8x1xf32>
    %cst_3 = arith.constant 0.000000e+00 : f32
    %6 = vector.broadcast %cst_3 : f32 to vector<8x1xf32>
    %7 = arith.subf %6, %5 : vector<8x1xf32>
    %8 = math.exp %7 : vector<8x1xf32>
    %9 = math.log1p %8 : vector<8x1xf32>
    %10 = arith.addf %4, %9 : vector<8x1xf32>
    %c0_4 = arith.constant 0 : index
    %c0_5 = arith.constant 0 : index
    %11 = vector.load %arg3[%c0_4, %c0_5] : memref<8x1xf32, #tpu.memory_space<vmem>>, vector<8x1xf32>
    %12 = arith.mulf %10, %11 : vector<8x1xf32>
    %cst_6 = arith.constant dense<0.000000e+00> : vector<1xf32>
    %13 = vector.multi_reduction <add>, %12, %cst_6 [0] : vector<8x1xf32> to vector<1xf32>
    %14 = vector.shape_cast %13 : vector<1xf32> to vector<1x1xf32>
    %cst_7 = arith.constant dense<0.000000e+00> : vector<1xf32>
    %15 = vector.multi_reduction <add>, %10, %cst_7 [0] : vector<8x1xf32> to vector<1xf32>
    %16 = vector.shape_cast %15 : vector<1xf32> to vector<1x1xf32>
    %cst_8 = arith.constant 8.000000e+00 : f32
    %17 = vector.broadcast %cst_8 : f32 to vector<1x1xf32>
    %18 = arith.mulf %17, %14 : vector<1x1xf32>
    %19 = tpu.reciprocal %16 : vector<1x1xf32> -> vector<1x1xf32>
    %20 = arith.mulf %18, %19 : vector<1x1xf32>
    %c0_9 = arith.constant 0 : index
    %c0_10 = arith.constant 0 : index
    %21 = vector.load %arg4[%c0_9, %c0_10] : memref<1x1xf32, #tpu.memory_space<vmem>>, vector<1x1xf32>
    tpu.vector_store %arg4[%c0_9, %c0_10], %20 {strides = array<i32>} : memref<1x1xf32, #tpu.memory_space<vmem>>, vector<1x1xf32>,
    return
  }
  func.func @transform_0(%arg0: i32) -> (i32, i32) {
    %c0_i32 = arith.constant 0 : i32
    %c0_i32_0 = arith.constant 0 : i32
    %c0_i32_1 = arith.constant 0 : i32
    return %c0_i32, %c0_i32_0 : i32, i32
  }
  func.func @transform_1(%arg0: i32) -> (i32, i32) {
    %c0_i32 = arith.constant 0 : i32
    %c0_i32_0 = arith.constant 0 : i32
    return %c0_i32, %arg0 : i32, i32
  }
  func.func @transform_2(%arg0: i32) -> (i32, i32) {
    %c0_i32 = arith.constant 0 : i32
    %c0_i32_0 = arith.constant 0 : i32
    return %c0_i32, %arg0 : i32, i32
  }
  func.func @transform_3(%arg0: i32) -> (i32, i32) {
    %c0_i32 = arith.constant 0 : i32
    %c0_i32_0 = arith.constant 0 : i32
    return %c0_i32, %arg0 : i32, i32
  }
}

</mosaic_0001>

<llo_original>
// kernel: tpu_custom_call.1
$region0: #{tpu_custom_call.1}
  #allocation0 [shape = 'u32[]', space=smem, size = 0x4, offset = 0x4, fixed_abs, tag = 'smem constant byte address 0x4 - core index']
  #allocation1 [shape = 'u32[72,128]{1,0:T(1,128)}', space=vmem, size = 0x9000, scoped, tag = 'internal scratch']
  %s0 = inlined_call_operand.vmem [shape: f32[8,1], index: 0, kind: input, shape index: {}]
  %s1 = inlined_call_operand.vmem [shape: f32[8,1], index: 1, kind: input, shape index: {}]
  %s2 = inlined_call_operand.vmem [shape: f32[8,1], index: 2, kind: input, shape index: {}]
  %s3 = inlined_call_operand.hbm [shape: f32[1,1], index: 3, kind: output, shape index: {}]
  %s4 = sld [smem:[#allocation0]]
  $region22: #{tpu_custom_call.1} parent=0
    _
  %s6 = ssub.s32 1, %s4
  %s7 = scalar_select 0, %s6, %s4
  $region1: #{tpu_custom_call.1} parent=0
    #allocation2 [shape = 'u8[512]{0}', space=vmem, size = 0x400, scoped, tag = 'output window, operand 0, single buffered']
    #allocation3 [shape = 's32[1]{0}', space=sflag, size = 0x4, scoped, tag = 'scoped memory for tpu_custom_call.1']
    %8 = vsyncpa [#allocation3], 0
    // Predicated region
    $region2: #{tpu_custom_call.1} parent=1 // pred_check
      _
    $region3: #{tpu_custom_call.1} parent=1 // pred_check_branch
      %10 = sbr.rel (0) target = $region5
    $region4: #{tpu_custom_call.1} parent=1 // pred_region
      _
    $region5: #{tpu_custom_call.1} parent=1 // pred_fallthru
      _
    // Predicated region
    $region6: #{tpu_custom_call.1} parent=1 // pred_check
      _
    $region7: #{tpu_custom_call.1} parent=1 // pred_check_branch
      %12 = sbr.rel (0) target = $region9
    $region8: #{tpu_custom_call.1} parent=1 // pred_region
      _
    $region9: #{tpu_custom_call.1} parent=1 // pred_fallthru
      _
    // Predicated region
    $region10: #{tpu_custom_call.1} parent=1 // pred_check
      _
    $region11: #{tpu_custom_call.1} parent=1 // pred_check_branch
      %14 = sbr.rel (0) target = $region13
    $region12: #{tpu_custom_call.1} parent=1 // pred_region
      _
    $region13: #{tpu_custom_call.1} parent=1 // pred_fallthru
      _
    %v15 = vld [vmem:[%s1] sm:$0xff]
    %v16 = vld [vmem:[%s0] sm:$0xff]
    %v17 = vmul.f32 %v15, %v16
    %v18 = vmax.f32 %v17, 0.0
    %v19 = vand.u32 2147483647, %v17
    %v20 = vsub.f32 0.0, %v19
    %v21 = vmul.f32 %v20, 1.442695
    %v22 = vpow.pop %v21
    %v23 = vadd.f32 %v22, 1.0
    %v24 = vlog2.pop %v23
    %v25 = vmul.f32 %v24, 0.6931472
    %v26 = vmul.f32 -0.5, %v22
    %v27 = vadd.f32 %v26, 1.0
    %v28 = vmul.f32 %v27, %v22
    %v29 = vand.u32 2147483647, %v22
    %vm30 = vcmp.lt.f32.partialorder %v29, 0.0004427343
    %v31 = vsel %vm30, %v28, %v25
    %v32 = vadd.f32 %v18, %v31
    %v33 = vld [vmem:[%s2] sm:$0xff]
    %v34 = vmul.f32 %v32, %v33
    %vm35 = vcmask 7168
    %v36 = vsel %vm35, %v34, 0.0
    %v37 = vrot.slane %v36, 4
    %v38 = vadd.f32 %v36, %v37
    %v39 = vrot.slane %v38, 2
    %v40 = vadd.f32 %v38, %v39
    %v41 = vrot.slane %v40, 1
    %v42 = vadd.f32 %v40, %v41
    %v43 = vsel %vm35, %v32, 0.0
    %v44 = vrot.slane %v43, 4
    %v45 = vadd.f32 %v43, %v44
    %v46 = vrot.slane %v45, 2
    %v47 = vadd.f32 %v45, %v46
    %v48 = vrot.slane %v47, 1
    %v49 = vadd.f32 %v47, %v48
    %v50 = vmul.f32 %v42, 8.0
    %v51 = vrcp.pop %v49
    %v52 = vmul.f32 %v49, %v51
    %v53 = vsub.f32 1.0, %v52
    %v54 = vmul.f32 %v51, %v53
    %v55 = vadd.f32 %v51, %v54
    %vm56 = vweird.f32 %v49
    %vm57 = vweird.f32 %v51
    %vm58 = vmor %vm56, %vm57
    %v59 = vsel %vm58, %v51, %v55
    %v60 = vand.u32 2147483647, %v49
    %vm61 = vcmp.eq.f32.partialorder %v60, 8.507059e+37
    %v62 = vand.u32 %v49, 2147483648
    %v63 = vor.u32 1.1754944e-38, %v62
    %v64 = vsel %vm61, %v63, %v59
    %v65 = vmul.f32 %v50, %v64
    %vm66 = vcmask 0
    %67 = vst.msk [vmem:[#allocation2] sm:$0x1] %vm66, %v65
    // Predicated region
    $region14: #{tpu_custom_call.1} parent=1 // pred_check
      _
    $region15: #{tpu_custom_call.1} parent=1 // pred_check_branch
      %69 = sbr.rel (0) target = $region17
    $region16: #{tpu_custom_call.1} parent=1 // pred_region
      %71 = vsyncadd [#allocation3], 0
      %s73 = sshll.u32 [#allocation2], 4
      %s74 = int_to_ptr.vmem [resolvable:$true] %s73
      %s75 = sshll.u32 %s3, 4
      %s76 = int_to_ptr.hbm [resolvable:$true] %s75
      %78 = dma.vmem_to_hbm [thread:$0]  %s74, 16, %s76, [#allocation3]
    $region17: #{tpu_custom_call.1} parent=1 // pred_fallthru
      _
    // Predicated region
    $region18: #{tpu_custom_call.1} parent=1 // pred_check
      _
    $region19: #{tpu_custom_call.1} parent=1 // pred_check_branch
      %80 = sbr.rel (0) target = $region21
    $region20: #{tpu_custom_call.1} parent=1 // pred_region
      %82 = dma.done [#allocation3], 16
    $region21: #{tpu_custom_call.1} parent=1 // pred_fallthru
      _
    %83 = vsyncpa [#allocation3], 1

</llo_original>
